<compile_context>
chip_gen: v7x
topology: tpu7x:2x2x1
jax: 0.10.0
libtpu: 0.0.40
codegen_flags: <defaults>
</compile_context>

<pallas_src>
import jax
import jax.numpy as jnp
from jax.experimental import pallas as pl
from jax.experimental.pallas import tpu as pltpu

TEMPERATURE = 0.07
BASE_TEMPERATURE = 0.07
C_THRESHOLD = 0.3
CONTRAST_MODE = "all"


def _make_supcon_kernel(bsz, n_views):
    """Builds the per-stripe kernel with static parameters baked in."""
    inv_temp = 1.0 / (TEMPERATURE + 1e-8)

    def kernel(a_ref, ct_ref, mv_ref, diag_ref, out_ref):
        # a_ref    : (TM, D)   bf16  anchor row stripe (streamed, pipelined)
        # ct_ref   : (D, N)    bf16  contrast features, pre-transposed, resident
        # mv_ref   : (TM, bsz) f32   Jaccard / mask values for this stripe
        # diag_ref : (TM, 1)   f32   self-pair Jaccard value per anchor row
        # out_ref  : (TM, 1)   f32   per-anchor mean positive log-prob

        a = a_ref[...]

        # (TM, N) anchor . contrast logits on the MXU: bf16 in, f32 accumulate.
        adc = jnp.dot(a, ct_ref[...], preferred_element_type=jnp.float32) * inv_temp

        row_max = jnp.max(adc, axis=1, keepdims=True)            # (TM, 1)
        logits = adc - row_max                                    # (TM, N)

        # Self logit recomputed off the (TM, N) tile: bf16*bf16 products are
        # exactly representable in f32, so this equals the MXU diagonal entry
        # up to accumulation order (~1e-7 relative).
        af = a.astype(jnp.float32)
        self_logit = jnp.sum(af * af, axis=1, keepdims=True) * inv_temp - row_max

        # Softmax denominator with the self pair removed analytically
        # (replaces the (TM, N) iota-built logits_mask).
        denom = jnp.sum(jnp.exp(logits), axis=1, keepdims=True) - jnp.exp(self_logit)
        log_den = jnp.log(denom + 1e-8)                           # (TM, 1)

        # Positive-pair weights live on the small (TM, bsz) block and are shared
        # by all n_views column groups (mask.repeat / multi_val.repeat in torch).
        mv = mv_ref[...]
        pos = jnp.where(mv >= C_THRESHOLD, 1.0, 0.0)              # binary mask
        mw = pos * mv                                             # mask * multi_val

        # sum over the n_views column groups of logits (static unrolled loop;
        # the weights are identical for every group so they factor out).
        group = logits[:, 0:bsz]
        for v in range(1, n_views):
            group = group + logits[:, v * bsz:(v + 1) * bsz]

        mw_sum = jnp.sum(mw, axis=1, keepdims=True)               # (TM, 1)
        pos_cnt = jnp.sum(pos, axis=1, keepdims=True)             # (TM, 1)

        # Self-pair (global diagonal) contribution, removed from num / den.
        dm = diag_ref[...]                                        # (TM, 1)
        dpos = jnp.where(dm >= C_THRESHOLD, 1.0, 0.0)

        num = (jnp.sum(mw * group, axis=1, keepdims=True)
               - log_den * (n_views * mw_sum)
               - dpos * dm * (self_logit - log_den))
        den = n_views * pos_cnt - dpos + 1e-8

        # Per-anchor mean positive log-prob; divide on the EUP.
        out_ref[...] = num * pl.reciprocal(den, approx=True)

    return kernel


def _choose_tm(n_total, cap=256):
    """Largest multiple-of-8 divisor of n_total, capped (MXU/VMEM friendly)."""
    best = None
    for cand in range(8, min(n_total, cap) + 1, 8):
        if n_total % cand == 0:
            best = cand
    if best is None:
        # TODO(synk): pad N to a multiple of 8 (and drop the padded rows from
        # the final mean) instead of a single unaligned full-size stripe.
        best = n_total
    return best


def _vmem_limit_bytes(tm, bsz, n_total, feat_dim):
    """Size the VMEM limit from the actual buffers, capped by chip capacity."""
    resident = 2 * (feat_dim * n_total * 2)          # (D, N) bf16, 2 buffers
    streamed = 2 * (tm * feat_dim * 2                # anchor stripe (bf16)
                    + tm * bsz * 4                   # Jaccard stripe (f32)
                    + tm * 4                         # diag stripe
                    + tm * 4)                        # output block
    temporaries = 6 * tm * n_total * 4               # (TM, N) f32 intermediates
    needed = resident + streamed + temporaries
    cap = 64 * 1024 * 1024                           # safe default (v7x physical)
    try:
        info = pltpu.get_tpu_info()
        cap = int(getattr(info, "vmem_capacity_bytes", cap))
    except Exception:
        pass
    return int(min(max(2 * needed, 16 * 1024 * 1024), (cap * 3) // 4))


def _jaccard_matrix(labels):
    """jaccard[x, y] = |min(l_x,l_y)| / |max(l_x,l_y)| (plain-JAX glue)."""
    la = labels[:, None, :].astype(jnp.float32)      # (B, 1, L)
    lb = labels[None, :, :].astype(jnp.float32)      # (1, B, L)
    upper = jnp.sum(jnp.minimum(la, lb), axis=-1)
    lower = jnp.sum(jnp.maximum(la, lb), axis=-1)
    return upper / (lower + 1e-8)


def multi_supcon_loss(features, labels=None, mask=None):
    """features: [bsz, n_views, feat_dim]; labels: [bsz, n_labels] (multi-hot)."""
    if features.ndim < 3:
        raise ValueError("`features` needs to be [bsz, n_views, ...]")
    if features.ndim > 3:
        features = features.reshape(features.shape[0], features.shape[1], -1)
    if CONTRAST_MODE != "all":
        raise ValueError("Only contrast_mode='all' implemented here")

    bsz, n_views, feat_dim = features.shape

    # One small (bsz, bsz) matrix carries both the positive mask and the Jaccard
    # weights; the kernel rebuilds the binary mask as (mval >= C_THRESHOLD).
    if labels is not None and mask is not None:
        raise ValueError("Cannot define both `labels` and `mask`")
    elif labels is None and mask is None:
        mval_small = jnp.eye(bsz, dtype=jnp.float32)              # SimCLR case
    elif labels is not None:
        if labels.ndim < 2:
            raise ValueError("This loss only works with multi-label problem")
        mval_small = _jaccard_matrix(labels)
    else:
        # Assumes a binary user-provided mask (as in the reference usage).
        mval_small = mask.astype(jnp.float32)

    n_total = n_views * bsz

    # contrast_feature = cat(unbind(features, dim=1), dim=0) -> view-major [N, D]
    anchors = (
        jnp.transpose(features, (1, 0, 2))
        .reshape(n_total, feat_dim)
        .astype(jnp.bfloat16)                                     # bf16 for the MXU
    )
    contrast_t = jnp.transpose(anchors)                           # (D, N) resident RHS

    # Per-anchor-row Jaccard stripes (repeat along the anchor axis) + diagonal.
    mval_anchor = jnp.tile(mval_small, (n_views, 1))              # (N, bsz) f32
    diag_anchor = jnp.tile(jnp.diagonal(mval_small), n_views).reshape(n_total, 1)

    tm = _choose_tm(n_total)
    n_stripes = n_total // tm
    grid = (n_stripes,)

    kernel = _make_supcon_kernel(bsz, n_views)

    out = pl.pallas_call(
        kernel,
        out_shape=jax.ShapeDtypeStruct((n_total, 1), jnp.float32),
        grid_spec=pltpu.PrefetchScalarGridSpec(
            num_scalar_prefetch=0,
            grid=grid,
            in_specs=[
                # Anchor row stripe, streamed & double-buffered per step.
                pl.BlockSpec((tm, feat_dim), lambda i: (i, 0)),
                # Pre-transposed contrast features, resident (constant block,
                # only DMA'd once since the block index never changes).
                pl.BlockSpec((feat_dim, n_total), lambda i: (0, 0)),
                # (TM, bsz) Jaccard / mask stripe for this anchor stripe.
                pl.BlockSpec((tm, bsz), lambda i: (i, 0)),
                # Self-pair Jaccard value per anchor row.
                pl.BlockSpec((tm, 1), lambda i: (i, 0)),
            ],
            out_specs=pl.BlockSpec((tm, 1), lambda i: (i, 0)),
        ),
        compiler_params=pltpu.CompilerParams(
            # Disjoint per-stripe outputs -> stripes can be split across
            # TensorCores (2x on v7x, no-op on v5e/v6e).
            dimension_semantics=("parallel",),
            vmem_limit_bytes=_vmem_limit_bytes(tm, bsz, n_total, feat_dim),
        ),
    )(anchors, contrast_t, mval_anchor, diag_anchor)

    # loss = -(T / base_T) * mean over all N anchors of the mean positive log-prob
    return -(TEMPERATURE / BASE_TEMPERATURE) * jnp.mean(out)


def _reference_loss(features, labels):
    """Pure-JAX reference mirroring the PyTorch forward (for validation)."""
    bsz, n_views, feat_dim = features.shape
    mval_small = _jaccard_matrix(labels)
    mask_small = jnp.where(mval_small >= C_THRESHOLD, 1.0, 0.0)
    cf = jnp.transpose(features, (1, 0, 2)).reshape(n_views * bsz, feat_dim)
    anchor_count = contrast_count = n_views
    N = anchor_count * bsz
    adc = jnp.matmul(cf, cf.T) / (TEMPERATURE + 1e-8)
    logits = adc - jnp.max(adc, axis=1, keepdims=True)
    mask_full = jnp.tile(mask_small, (anchor_count, contrast_count))
    mval_full = jnp.tile(mval_small, (anchor_count, contrast_count))
    logits_mask = 1.0 - jnp.eye(N, dtype=jnp.float32)
    mask_full = mask_full * logits_mask
    exp_logits = jnp.exp(logits) * logits_mask
    log_prob = logits - jnp.log(jnp.sum(exp_logits, axis=1, keepdims=True) + 1e-8)
    multi_log_prob = log_prob * mval_full
    mean_pos = jnp.sum(mask_full * multi_log_prob, axis=1) / (
        jnp.sum(mask_full, axis=1) + 1e-8
    )
    loss = -(TEMPERATURE / BASE_TEMPERATURE) * mean_pos
    return jnp.mean(loss.reshape(anchor_count, bsz))


if __name__ == "__main__":
    key = jax.random.PRNGKey(0)
    k_feat, k_lab = jax.random.split(key)

    bsz, n_views, feat_dim, n_labels = 8, 2, 32, 9  # 9 subcellular locations

    features = jax.random.normal(k_feat, (bsz, n_views, feat_dim), dtype=jnp.float32)
    # L2-normalize features (standard for SupCon-style losses)
    features = features / (
        jnp.linalg.norm(features, axis=-1, keepdims=True) + 1e-8
    )

    # deterministic multi-hot labels
    labels = (jax.random.uniform(k_lab, (bsz, n_labels)) > 0.6).astype(jnp.float32)
    # ensure every sample has at least one positive label
    labels = labels.at[:, 0].set(
        jnp.where(jnp.sum(labels, axis=1) == 0, 1.0, labels[:, 0])
    )

    loss = jax.block_until_ready(multi_supcon_loss(features, labels=labels))
    ref = jax.block_until_ready(_reference_loss(features, labels))
    # bf16 MXU inputs (f32 accumulation / softmax math) -> relaxed tolerance.
    assert jnp.allclose(loss, ref, rtol=5e-2, atol=5e-2), (loss, ref)

    print("KERNEL_OK")
</pallas_src>

<mosaic_0001>
module attributes {stable_mosaic.version = 11 : i64} {
  func.func @kernel(%arg0: i32, %arg1: memref<16x32xbf16, #tpu.memory_space<vmem>>, %arg2: memref<32x16xbf16, #tpu.memory_space<vmem>>, %arg3: memref<16x8xf32, #tpu.memory_space<vmem>>, %arg4: memref<16x1xf32, #tpu.memory_space<vmem>>, %arg5: memref<16x1xf32, #tpu.memory_space<vmem>>) attributes {dimension_semantics = [#tpu.dimension_semantics<parallel>], iteration_bounds = array<i64: 1>, scalar_prefetch = 0 : i64, scratch_operands = 0 : i64, tpu.core_type = #tpu.core_type<tc>, window_params = [{transform_indices = @transform_0, window_bounds = array<i64: 16, 32>}, {pipeline_mode = #tpu.pipeline_mode<synchronous>, transform_indices = @transform_1, window_bounds = array<i64: 32, 16>}, {transform_indices = @transform_2, window_bounds = array<i64: 16, 8>}, {transform_indices = @transform_3, window_bounds = array<i64: 16, 1>}, {transform_indices = @transform_4, window_bounds = array<i64: 16, 1>}]} {
    %c0 = arith.constant 0 : index
    %c0_0 = arith.constant 0 : index
    %0 = vector.load %arg1[%c0, %c0_0] : memref<16x32xbf16, #tpu.memory_space<vmem>>, vector<16x32xbf16>
    %c0_1 = arith.constant 0 : index
    %c0_2 = arith.constant 0 : index
    %1 = vector.load %arg2[%c0_1, %c0_2] : memref<32x16xbf16, #tpu.memory_space<vmem>>, vector<32x16xbf16>
    %cst = arith.constant dense<0.000000e+00> : vector<16x16xf32>
    %2 = tpu.matmul %0, %1, %cst {dimension_numbers = #tpu.dot_dimension_numbers<[1], [0], [0], [1], [0, 0, 1, 1], [], []>} : vector<16x32xbf16>, vector<32x16xbf16>, vector<16x16xf32> -> vector<16x16xf32>
    %cst_3 = arith.constant 14.2857122 : f32
    %3 = vector.broadcast %cst_3 : f32 to vector<16x16xf32>
    %4 = arith.mulf %2, %3 : vector<16x16xf32>
    %cst_4 = arith.constant dense<0xFF800000> : vector<16xf32>
    %5 = vector.multi_reduction <maximumf>, %4, %cst_4 [1] : vector<16x16xf32> to vector<16xf32>
    %6 = vector.shape_cast %5 : vector<16xf32> to vector<16x1xf32>
    %7 = vector.broadcast %6 : vector<16x1xf32> to vector<16x16xf32>
    %8 = arith.subf %4, %7 : vector<16x16xf32>
    %9 = arith.extf %0 : vector<16x32xbf16> to vector<16x32xf32>
    %10 = arith.mulf %9, %9 : vector<16x32xf32>
    %cst_5 = arith.constant dense<0.000000e+00> : vector<16xf32>
    %11 = vector.multi_reduction <add>, %10, %cst_5 [1] : vector<16x32xf32> to vector<16xf32>
    %12 = vector.shape_cast %11 : vector<16xf32> to vector<16x1xf32>
    %cst_6 = arith.constant 14.2857122 : f32
    %13 = vector.broadcast %cst_6 : f32 to vector<16x1xf32>
    %14 = arith.mulf %12, %13 : vector<16x1xf32>
    %15 = arith.subf %14, %6 : vector<16x1xf32>
    %16 = math.exp %8 : vector<16x16xf32>
    %cst_7 = arith.constant dense<0.000000e+00> : vector<16xf32>
    %17 = vector.multi_reduction <add>, %16, %cst_7 [1] : vector<16x16xf32> to vector<16xf32>
    %18 = vector.shape_cast %17 : vector<16xf32> to vector<16x1xf32>
    %19 = math.exp %15 : vector<16x1xf32>
    %20 = arith.subf %18, %19 : vector<16x1xf32>
    %cst_8 = arith.constant 9.99999993E-9 : f32
    %21 = vector.broadcast %cst_8 : f32 to vector<16x1xf32>
    %22 = arith.addf %20, %21 : vector<16x1xf32>
    %23 = math.log %22 : vector<16x1xf32>
    %c0_9 = arith.constant 0 : index
    %c0_10 = arith.constant 0 : index
    %24 = vector.load %arg3[%c0_9, %c0_10] : memref<16x8xf32, #tpu.memory_space<vmem>>, vector<16x8xf32>
    %cst_11 = arith.constant 3.000000e-01 : f32
    %25 = vector.broadcast %cst_11 : f32 to vector<16x8xf32>
    %26 = arith.cmpf oge, %24, %25 : vector<16x8xf32>
    %cst_12 = arith.constant 1.000000e+00 : f32
    %cst_13 = arith.constant 0.000000e+00 : f32
    %27 = vector.broadcast %cst_12 : f32 to vector<16x8xf32>
    %28 = vector.broadcast %cst_13 : f32 to vector<16x8xf32>
    %29 = arith.select %26, %27, %28 : vector<16x8xi1>, vector<16x8xf32>
    %30 = arith.mulf %29, %24 : vector<16x8xf32>
    %31 = vector.extract_strided_slice %8 {offsets = [0, 0], sizes = [16, 8], strides = [1, 1]} : vector<16x16xf32> to vector<16x8xf32>
    %32 = vector.extract_strided_slice %8 {offsets = [0, 8], sizes = [16, 8], strides = [1, 1]} : vector<16x16xf32> to vector<16x8xf32>
    %33 = arith.addf %31, %32 : vector<16x8xf32>
    %cst_14 = arith.constant dense<0.000000e+00> : vector<16xf32>
    %34 = vector.multi_reduction <add>, %30, %cst_14 [1] : vector<16x8xf32> to vector<16xf32>
    %35 = vector.shape_cast %34 : vector<16xf32> to vector<16x1xf32>
    %cst_15 = arith.constant dense<0.000000e+00> : vector<16xf32>
    %36 = vector.multi_reduction <add>, %29, %cst_15 [1] : vector<16x8xf32> to vector<16xf32>
    %37 = vector.shape_cast %36 : vector<16xf32> to vector<16x1xf32>
    %c0_16 = arith.constant 0 : index
    %c0_17 = arith.constant 0 : index
    %38 = vector.load %arg4[%c0_16, %c0_17] : memref<16x1xf32, #tpu.memory_space<vmem>>, vector<16x1xf32>
    %cst_18 = arith.constant 3.000000e-01 : f32
    %39 = vector.broadcast %cst_18 : f32 to vector<16x1xf32>
    %40 = arith.cmpf oge, %38, %39 : vector<16x1xf32>
    %cst_19 = arith.constant 1.000000e+00 : f32
    %cst_20 = arith.constant 0.000000e+00 : f32
    %41 = vector.broadcast %cst_19 : f32 to vector<16x1xf32>
    %42 = vector.broadcast %cst_20 : f32 to vector<16x1xf32>
    %43 = arith.select %40, %41, %42 : vector<16x1xi1>, vector<16x1xf32>
    %44 = arith.mulf %30, %33 : vector<16x8xf32>
    %cst_21 = arith.constant dense<0.000000e+00> : vector<16xf32>
    %45 = vector.multi_reduction <add>, %44, %cst_21 [1] : vector<16x8xf32> to vector<16xf32>
    %46 = vector.shape_cast %45 : vector<16xf32> to vector<16x1xf32>
    %cst_22 = arith.constant 2.000000e+00 : f32
    %47 = vector.broadcast %cst_22 : f32 to vector<16x1xf32>
    %48 = arith.mulf %47, %35 : vector<16x1xf32>
    %49 = arith.mulf %23, %48 : vector<16x1xf32>
    %50 = arith.subf %46, %49 : vector<16x1xf32>
    %51 = arith.mulf %43, %38 : vector<16x1xf32>
    %52 = arith.subf %15, %23 : vector<16x1xf32>
    %53 = arith.mulf %51, %52 : vector<16x1xf32>
    %54 = arith.subf %50, %53 : vector<16x1xf32>
    %cst_23 = arith.constant 2.000000e+00 : f32
    %55 = vector.broadcast %cst_23 : f32 to vector<16x1xf32>
    %56 = arith.mulf %55, %37 : vector<16x1xf32>
    %57 = arith.subf %56, %43 : vector<16x1xf32>
    %cst_24 = arith.constant 9.99999993E-9 : f32
    %58 = vector.broadcast %cst_24 : f32 to vector<16x1xf32>
    %59 = arith.addf %57, %58 : vector<16x1xf32>
    %60 = tpu.reciprocal %59 {approx = true} : vector<16x1xf32> -> vector<16x1xf32>
    %61 = arith.mulf %54, %60 : vector<16x1xf32>
    %c0_25 = arith.constant 0 : index
    %c0_26 = arith.constant 0 : index
    %62 = vector.load %arg5[%c0_25, %c0_26] : memref<16x1xf32, #tpu.memory_space<vmem>>, vector<16x1xf32>
    tpu.vector_store %arg5[%c0_25, %c0_26], %61 {strides = array<i32>} : memref<16x1xf32, #tpu.memory_space<vmem>>, vector<16x1xf32>,
    return
  }
  func.func @transform_0(%arg0: i32) -> (i32, i32) {
    %c0_i32 = arith.constant 0 : i32
    %c0_i32_0 = arith.constant 0 : i32
    return %arg0, %c0_i32 : i32, i32
  }
  func.func @transform_1(%arg0: i32) -> (i32, i32) {
    %c0_i32 = arith.constant 0 : i32
    %c0_i32_0 = arith.constant 0 : i32
    %c0_i32_1 = arith.constant 0 : i32
    return %c0_i32, %c0_i32_0 : i32, i32
  }
  func.func @transform_2(%arg0: i32) -> (i32, i32) {
    %c0_i32 = arith.constant 0 : i32
    %c0_i32_0 = arith.constant 0 : i32
    return %arg0, %c0_i32 : i32, i32
  }
  func.func @transform_3(%arg0: i32) -> (i32, i32) {
    %c0_i32 = arith.constant 0 : i32
    %c0_i32_0 = arith.constant 0 : i32
    return %arg0, %c0_i32 : i32, i32
  }
  func.func @transform_4(%arg0: i32) -> (i32, i32) {
    %c0_i32 = arith.constant 0 : i32
    %c0_i32_0 = arith.constant 0 : i32
    return %arg0, %c0_i32 : i32, i32
  }
}

</mosaic_0001>

<llo_original>
// kernel: tpu_custom_call.1
$region0: #{tpu_custom_call.1}
  #allocation0 [shape = 'u32[]', space=smem, size = 0x4, offset = 0x4, fixed_abs, tag = 'smem constant byte address 0x4 - core index']
  #allocation1 [shape = 'u32[144,128]{1,0:T(1,128)}', space=vmem, size = 0x12000, scoped, tag = 'internal scratch']
  %s0 = inlined_call_operand.vmem [shape: bf16[16,32], index: 0, kind: input, shape index: {}]
  %s1 = inlined_call_operand.vmem [shape: bf16[32,16], index: 1, kind: input, shape index: {}]
  %s2 = inlined_call_operand.vmem [shape: f32[16,8], index: 2, kind: input, shape index: {}]
  %s3 = inlined_call_operand.vmem [shape: f32[16,1], index: 3, kind: input, shape index: {}]
  %s4 = inlined_call_operand.vmem [shape: f32[16,1], index: 4, kind: output, shape index: {}]
  %s5 = sld [smem:[#allocation0]]
  $region26: #{tpu_custom_call.1} parent=0
    _
  %s7 = ssub.s32 1, %s5
  %s8 = scalar_select 0, %s7, %s5
  // Predicated region
  $region2: #{tpu_custom_call.1} parent=0 // pred_check
    _
  $region3: #{tpu_custom_call.1} parent=0 // pred_check_branch
    %10 = sbr.rel (0) target = $region5
  $region4: #{tpu_custom_call.1} parent=0 // pred_region
    _
  $region5: #{tpu_custom_call.1} parent=0 // pred_fallthru
    _
  // Predicated region
  $region6: #{tpu_custom_call.1} parent=0 // pred_check
    _
  $region7: #{tpu_custom_call.1} parent=0 // pred_check_branch
    %12 = sbr.rel (0) target = $region9
  $region8: #{tpu_custom_call.1} parent=0 // pred_region
    _
  $region9: #{tpu_custom_call.1} parent=0 // pred_fallthru
    _
  // Predicated region
  $region10: #{tpu_custom_call.1} parent=0 // pred_check
    _
  $region11: #{tpu_custom_call.1} parent=0 // pred_check_branch
    %14 = sbr.rel (0) target = $region13
  $region12: #{tpu_custom_call.1} parent=0 // pred_region
    _
  $region13: #{tpu_custom_call.1} parent=0 // pred_fallthru
    _
  // Predicated region
  $region14: #{tpu_custom_call.1} parent=0 // pred_check
    _
  $region15: #{tpu_custom_call.1} parent=0 // pred_check_branch
    %16 = sbr.rel (0) target = $region17
  $region16: #{tpu_custom_call.1} parent=0 // pred_region
    _
  $region17: #{tpu_custom_call.1} parent=0 // pred_fallthru
    _
  %v18 = vld [vmem:[%s0] sm:$0xf]
  %v19 = vld [vmem:[%s0 + $0x4] sm:$0xf]
  %v20 = vld [vmem:[%s1] sm:$0xf]
  %v21 = vld [vmem:[%s1 + $0x4] sm:$0xf]
  %v22 = vld [vmem:[%s1 + $0x8] sm:$0xf]
  %v23 = vld [vmem:[%s1 + $0xc] sm:$0xf]
  %v26 = vunpack.c.l.b16 %v18
  %v27 = vunpack.c.l.b16 %v19
  %v28 = vpack.c.b16 %v27, %v26
  %v33 = vunpack.c.l.b16 %v20
  %v34 = vunpack.c.l.b16 %v21
  %v35 = vunpack.c.l.b16 %v22
  %v36 = vunpack.c.l.b16 %v23
  %v37 = vpack.c.b16 %v34, %v33
  %v38 = vpack.c.b16 %v36, %v35
  %vm41 = vcmask 261120
  %v43 = vsel %vm41, %v28, 0
  %45 = vmatprep.subr.bf16.mxu0 0
  %46 = vmatpush1.bf16.msra.mxu0 %v37
  %47 = vmatprep.subr.bf16.mxu0 0
  %48 = vmatpush1.bf16.msra.mxu0 %v38
  %49 = vmatprep.subr.bf16.mxu0 0
  %50 = vmatpush1.bf16.msra.mxu0 0
  %51 = vmatprep.subr.bf16.mxu0 0
  %52 = vmatpush1.bf16.msra.mxu0 0
  %53 = vmatprep.subr.bf16.mxu0 0
  %54 = vmatpush1.bf16.msra.mxu0 0
  %55 = vmatprep.subr.bf16.mxu0 0
  %56 = vmatpush1.bf16.msra.mxu0 0
  %57 = vmatprep.subr.bf16.mxu0 0
  %58 = vmatpush1.bf16.msra.mxu0 0
  %59 = vmatprep.subr.bf16.mxu0 0
  %60 = vmatpush1.bf16.msra.mxu0 0
  %61 = vmatprep.subr.bf16.mxu0 0
  %62 = vmatpush1.bf16.msra.mxu0 0
  %63 = vmatprep.subr.bf16.mxu0 0
  %64 = vmatpush1.bf16.msra.mxu0 0
  %65 = vmatprep.subr.bf16.mxu0 0
  %66 = vmatpush1.bf16.msra.mxu0 0
  %67 = vmatprep.subr.bf16.mxu0 0
  %68 = vmatpush1.bf16.msra.mxu0 0
  %69 = vmatprep.subr.bf16.mxu0 0
  %70 = vmatpush1.bf16.msra.mxu0 0
  %71 = vmatprep.subr.bf16.mxu0 0
  %72 = vmatpush1.bf16.msra.mxu0 0
  %73 = vmatprep.subr.bf16.mxu0 0
  %74 = vmatpush1.bf16.msra.mxu0 0
  %75 = vmatprep.subr.bf16.mxu0 0
  %76 = vmatpush1.bf16.msra.mxu0 0
  %77 = vmatprep.mubr.bf16.mxu0 0
  %78 = vmatmul.mubr.bf16.gmra.mrb[0].mxu0 %v43
  %v79 = vpop.f32.mrb[0].mxu0
  %v80 = vadd.f32 0.0, %v79
  %v81 = vpop.f32.mrb[0].mxu0
  %v82 = vpop.f32.mrb[0].mxu0
  %v83 = vadd.f32 0.0, %v82
  %v84 = vpop.f32.mrb[0].mxu0
  %85 = vdwg.mxu0
  %v86 = vmul.f32 %v80, 14.285712
  %v87 = vmul.f32 %v83, 14.285712
  %vm88 = vcmask 130048
  %v89 = vsel %vm88, %v86, -inf
  %90 = vmax.xlane.f32.xlu0 %v89
  %v91 = vpop.xlane.xlu0 %90
  %v92 = vsel %vm88, %v87, -inf
  %93 = vmax.xlane.f32.xlu0 %v92
  %v94 = vpop.xlane.xlu0 %93
  %v95 = vsub.f32 %v86, %v91
  %v96 = vsub.f32 %v87, %v94
  %v97 = vunpack.c.l.bf16 %v18
  %v98 = vunpack.c.l.bf16 %v19
  %v99 = vmul.f32 %v97, %v97
  %v100 = vmul.f32 %v98, %v98
  %v101 = vsel %vm41, %v99, 0.0
  %102 = vadd.xlane.f32.xlu0 %v101
  %v103 = vpop.xlane.xlu0 %102
  %v104 = vsel %vm41, %v100, 0.0
  %105 = vadd.xlane.f32.xlu0 %v104
  %v106 = vpop.xlane.xlu0 %105
  %v107 = vmul.f32 %v103, 14.285712
  %v108 = vmul.f32 %v106, 14.285712
  %v109 = vsub.f32 %v107, %v91
  %v110 = vsub.f32 %v108, %v94
  %v111 = vmul.f32 %v95, 1.442695
  %v112 = vpow.pop %v111
  %v113 = vmul.f32 %v96, 1.442695
  %v114 = vpow.pop %v113
  %v115 = vsel %vm88, %v112, 0.0
  %116 = vadd.xlane.f32.xlu0 %v115
  %v117 = vpop.xlane.xlu0 %116
  %v118 = vsel %vm88, %v114, 0.0
  %119 = vadd.xlane.f32.xlu0 %v118
  %v120 = vpop.xlane.xlu0 %119
  %v121 = vmul.f32 %v109, 1.442695
  %v122 = vpow.pop %v121
  %v123 = vmul.f32 %v110, 1.442695
  %v124 = vpow.pop %v123
  %v125 = vsub.f32 %v117, %v122
  %v126 = vsub.f32 %v120, %v124
  %v127 = vadd.f32 %v125, 1e-08
  %v128 = vadd.f32 %v126, 1e-08
  %v129 = vlog2.pop %v127
  %v130 = vmul.f32 %v129, 0.6931472
  %v131 = vlog2.pop %v128
  %v132 = vmul.f32 %v131, 0.6931472
  %v133 = vld [vmem:[%s2] sm:$0xff]
  %v134 = vld [vmem:[%s2 + $0x8] sm:$0xff]
  %vm135 = vcmp.ge.f32.partialorder %v133, 0.3
  %vm136 = vcmp.ge.f32.partialorder %v134, 0.3
  %v137 = vsel %vm135, 1.0, 0.0
  %v138 = vsel %vm136, 1.0, 0.0
  %v139 = vmul.f32 %v137, %v133
  %v140 = vmul.f32 %v138, %v134
  %143 = vrot.lane.b32.xlu0 %v95, 120
  %v144 = vpop.permute.xlu0 %143
  %145 = vrot.lane.b32.xlu0 %v96, 120
  %v146 = vpop.permute.xlu0 %145
  %v149 = vadd.f32 %v95, %v144
  %v150 = vadd.f32 %v96, %v146
  %vm151 = vcmask 64512
  %v152 = vsel %vm151, %v139, 0.0
  %153 = vadd.xlane.f32.xlu0 %v152
  %v154 = vpop.xlane.xlu0 %153
  %v155 = vsel %vm151, %v140, 0.0
  %156 = vadd.xlane.f32.xlu0 %v155
  %v157 = vpop.xlane.xlu0 %156
  %v158 = vsel %vm151, %v137, 0.0
  %159 = vadd.xlane.f32.xlu0 %v158
  %v160 = vpop.xlane.xlu0 %159
  %v161 = vsel %vm151, %v138, 0.0
  %162 = vadd.xlane.f32.xlu0 %v161
  %v163 = vpop.xlane.xlu0 %162
  %v164 = vld [vmem:[%s3] sm:$0xff]
  %v165 = vld [vmem:[%s3 + $0x8] sm:$0xff]
  %vm166 = vcmp.ge.f32.partialorder %v164, 0.3
  %vm167 = vcmp.ge.f32.partialorder %v165, 0.3
  %v168 = vsel %vm166, 1.0, 0.0
  %v169 = vsel %vm167, 1.0, 0.0
  %v170 = vmul.f32 %v139, %v149
  %v171 = vmul.f32 %v140, %v150
  %v172 = vsel %vm151, %v170, 0.0
  %173 = vadd.xlane.f32.xlu0 %v172
  %v174 = vpop.xlane.xlu0 %173
  %v175 = vsel %vm151, %v171, 0.0
  %176 = vadd.xlane.f32.xlu0 %v175
  %v177 = vpop.xlane.xlu0 %176
  %v178 = vmul.f32 %v154, 2.0
  %v179 = vmul.f32 %v157, 2.0
  %v180 = vmul.f32 %v130, %v178
  %v181 = vmul.f32 %v132, %v179
  %v182 = vsub.f32 %v174, %v180
  %v183 = vsub.f32 %v177, %v181
  %v184 = vmul.f32 %v168, %v164
  %v185 = vmul.f32 %v169, %v165
  %v186 = vsub.f32 %v109, %v130
  %v187 = vsub.f32 %v110, %v132
  %v188 = vmul.f32 %v184, %v186
  %v189 = vmul.f32 %v185, %v187
  %v190 = vsub.f32 %v182, %v188
  %v191 = vsub.f32 %v183, %v189
  %v192 = vmul.f32 %v160, 2.0
  %v193 = vmul.f32 %v163, 2.0
  %v194 = vsub.f32 %v192, %v168
  %v195 = vsub.f32 %v193, %v169
  %v196 = vadd.f32 %v194, 1e-08
  %v197 = vadd.f32 %v195, 1e-08
  %v198 = vrcp.pop %v196
  %v199 = vrcp.pop %v197
  %v200 = vmul.f32 %v190, %v198
  %v201 = vmul.f32 %v191, %v199
  %vm202 = vcmask 7168
  %203 = vst.msk [vmem:[%s4] sm:$0xff] %vm202, %v200
  %204 = vst.msk [vmem:[%s4 + $0x8] sm:$0xff] %vm202, %v201
  // Predicated region
  $region18: #{tpu_custom_call.1} parent=0 // pred_check
    _
  $region19: #{tpu_custom_call.1} parent=0 // pred_check_branch
    %206 = sbr.rel (0) target = $region21
  $region20: #{tpu_custom_call.1} parent=0 // pred_region
    _
  $region21: #{tpu_custom_call.1} parent=0 // pred_fallthru
    _
  // Predicated region
  $region22: #{tpu_custom_call.1} parent=0 // pred_check
    _
  $region23: #{tpu_custom_call.1} parent=0 // pred_check_branch
    %208 = sbr.rel (0) target = $region25
  $region24: #{tpu_custom_call.1} parent=0 // pred_region
    _
  $region25: #{tpu_custom_call.1} parent=0 // pred_fallthru
    _

</llo_original>
